<compile_context>
chip_gen: v7x
topology: tpu7x:2x2x1
jax: 0.10.0
libtpu: 0.0.40
codegen_flags: <defaults>
</compile_context>

<pallas_src>
import functools

import jax
import jax.numpy as jnp
from jax.experimental import pallas as pl
from jax.experimental.pallas import tpu as pltpu


def _eca_kernel(w_ref, b_ref, *refs, k_size, c_tile, halo_c, num_c_tiles,
                has_halo, inv_len):
    pad = (k_size - 1) // 2
    if has_halo:
        xl_ref, xm_ref, xr_ref, o_ref = refs
    else:
        xm_ref, o_ref = refs

    xm = xm_ref[...]                                             # (BT, CT, L) native dtype
    # Adaptive average pool over L; accumulate in f32, result (BT, CT).
    pooled = jnp.sum(xm, axis=-1, dtype=jnp.float32) * inv_len

    # k-tap channel conv, in-tile part (zero outside the tile; halo adds the rest).
    idx = jax.lax.broadcasted_iota(jnp.int32, (1, c_tile), 1)
    acc = jnp.full((1, c_tile), b_ref[0], dtype=jnp.float32)
    for j in range(k_size):
        d = j - pad
        if d == 0:
            acc = acc + w_ref[j] * pooled
        else:
            shifted = jnp.roll(pooled, shift=-d, axis=1)
            valid = (idx + d >= 0) & (idx + d < c_tile)
            acc = acc + w_ref[j] * jnp.where(valid, shifted, 0.0)

    if has_halo:
        ct = pl.program_id(1)
        left_on = (ct > 0).astype(jnp.float32)                   # global left edge -> 0
        right_on = (ct + 1 < num_c_tiles).astype(jnp.float32)    # global right edge -> 0
        pooled_l = jnp.sum(xl_ref[...], axis=-1, dtype=jnp.float32) * inv_len   # (BT, halo_c)
        pooled_r = jnp.sum(xr_ref[...], axis=-1, dtype=jnp.float32) * inv_len   # (BT, halo_c)

        corr = jnp.zeros((1, c_tile), jnp.float32)
        # Left halo element h = pooled value of global channel (tile_start - pad + h).
        for h in range(pad):
            src = pooled_l[:, halo_c - pad + h: halo_c - pad + h + 1]           # (BT, 1)
            for c in range(h + 1):
                j = h - c
                corr = corr + left_on * w_ref[j] * src * (idx == c).astype(jnp.float32)
        # Right halo element h = pooled value of global channel (tile_end + h).
        for h in range(pad):
            src = pooled_r[:, h: h + 1]                                          # (BT, 1)
            for m in range(pad - h):
                c = c_tile - 1 - m
                j = h + pad + 1 + m
                corr = corr + right_on * w_ref[j] * src * (idx == c).astype(jnp.float32)
        acc = acc + corr

    gate = jax.nn.sigmoid(acc).astype(o_ref.dtype)               # (BT, CT)
    # Gate in the native dtype; no full-tile f32 copy is ever stored.
    o_ref[...] = (xm * gate[:, :, None]).astype(o_ref.dtype)


def _default_vmem_limit_bytes():
    """3/4 of physical VMEM: ~96 MiB on v5e/v6e (128 MiB), ~48 MiB on v7x (64 MiB)."""
    cap = 64 * 1024 * 1024          # conservative default = v7x per-core VMEM
    try:
        info = pltpu.get_tpu_info()
        cap = int(getattr(info, "vmem_capacity_bytes", cap))
    except Exception:
        pass
    return (3 * cap) // 4


def _choose_tiles(B, C, L, itemsize, sublane, pad, budget_bytes):
    """Pick (b_tile, c_tile).

    Prefers full-C tiles (no conv halo) with the batch tile grown until
    per-step traffic fills the budget; falls back to sublane-aligned channel
    tiling (with halo) only when a single batch row of the full channel dim
    does not fit.  Keeps >= 2 grid steps when possible (v7x megacore).
    """
    def tile_bytes(bt, ct, halo_c):
        # in + out double-buffered main tiles, plus two double-buffered halo tiles.
        return (4 * bt * ct * L + 4 * bt * halo_c * L) * itemsize

    base = tile_bytes(1, C, 0)
    if base <= budget_bytes:
        max_bt = max(1, min(B, budget_bytes // base))
        b_tile = 1
        for bt in range(max_bt, 0, -1):
            if B % bt == 0:
                b_tile = bt
                break
        if b_tile == B and B > 1:
            # Keep at least two grid steps so both v7x TensorCores share the work.
            for bt in range(B // 2, 0, -1):
                if B % bt == 0:
                    b_tile = bt
                    break
        elif B == 1:
            # Single batch row: split C in two (halo cost is tiny) so a v7x
            # megacore still has two parallel steps.
            half = C // 2
            if (C % 2 == 0 and half >= sublane and half % sublane == 0
                    and pad <= sublane):
                return 1, half
        return b_tile, C

    # A full channel row does not fit: channel tiling with halo.
    if C % sublane == 0 and pad <= sublane and C > sublane:
        halo_c = sublane if pad > 0 else 0
        smallest_ct = None
        for ct in range(C - sublane, sublane - 1, -sublane):
            if C % ct != 0:
                continue
            if tile_bytes(1, ct, halo_c) <= budget_bytes:
                return 1, ct          # largest fitting tile -> halo fraction stays small
            smallest_ct = ct
        if smallest_ct is not None:
            # Nothing meets the budget; take the smallest aligned tile and let the
            # granted VMEM limit arbitrate.
            # TODO(synk): pool-then-gate L-split path for extreme L.
            return 1, smallest_ct
    return 1, C


def eca_layer(x, weight, bias, *, k_size=3, c_tile=None, b_tile=None,
              vmem_limit_bytes=None):
    """x: (B, C, L), weight: (k_size,), bias: (1,). Returns (B, C, L)."""
    B, C, L = x.shape
    pad = (k_size - 1) // 2
    itemsize = jnp.dtype(x.dtype).itemsize
    sublane = {4: 8, 2: 16, 1: 32}.get(itemsize, 8)

    if vmem_limit_bytes is None:
        vmem_limit_bytes = _default_vmem_limit_bytes()
    # Tile-selection budget == granted VMEM limit (minus a small scratch reserve).
    budget = max(vmem_limit_bytes - 2 * 1024 * 1024, 1024 * 1024)

    auto_b, auto_c = _choose_tiles(B, C, L, itemsize, sublane, pad, budget)
    if b_tile is None:
        b_tile = auto_b
    if c_tile is None:
        c_tile = auto_c

    # Validate (explicit or auto) tile choices; fall back to safe values.
    if b_tile <= 0 or B % b_tile != 0:
        b_tile = 1
    halo_ok = (0 < c_tile < C and C % c_tile == 0 and c_tile % sublane == 0
               and C % sublane == 0 and pad <= sublane and pad <= c_tile)
    if not halo_ok:
        c_tile = C

    num_b_tiles = B // b_tile
    num_c_tiles = C // c_tile
    has_halo = num_c_tiles > 1 and pad > 0          # k_size == 1 never DMAs halos
    halo_c = sublane if has_halo else 0

    kernel = functools.partial(
        _eca_kernel, k_size=k_size, c_tile=c_tile, halo_c=halo_c,
        num_c_tiles=num_c_tiles, has_halo=has_halo, inv_len=1.0 / L)

    smem = pl.BlockSpec(memory_space=pltpu.MemorySpace.SMEM)
    main_spec = pl.BlockSpec((b_tile, c_tile, L), lambda b, ct: (b, ct, 0))

    if has_halo:
        bpt = c_tile // halo_c          # halo blocks per C tile
        nhb = C // halo_c               # halo blocks along C
        left_spec = pl.BlockSpec(
            (b_tile, halo_c, L),
            lambda b, ct: (b, jnp.maximum(ct * bpt - 1, 0), 0))
        right_spec = pl.BlockSpec(
            (b_tile, halo_c, L),
            lambda b, ct: (b, jnp.minimum((ct + 1) * bpt, nhb - 1), 0))
        in_specs = [smem, smem, left_spec, main_spec, right_spec]
        operands = (weight, bias, x, x, x)
    else:
        in_specs = [smem, smem, main_spec]
        operands = (weight, bias, x)

    bytes_accessed = 2 * B * C * L * itemsize
    if has_halo:
        bytes_accessed += 2 * B * num_c_tiles * halo_c * L * itemsize
    cost = pl.CostEstimate(
        flops=2 * B * C * L + 2 * k_size * B * C,
        transcendentals=B * C,
        bytes_accessed=bytes_accessed)

    return pl.pallas_call(
        kernel,
        out_shape=jax.ShapeDtypeStruct((B, C, L), x.dtype),
        grid_spec=pl.GridSpec(
            grid=(num_b_tiles, num_c_tiles),
            in_specs=in_specs,
            out_specs=pl.BlockSpec((b_tile, c_tile, L), lambda b, ct: (b, ct, 0)),
        ),
        compiler_params=pltpu.CompilerParams(
            dimension_semantics=("parallel", "parallel"),
            vmem_limit_bytes=vmem_limit_bytes,
        ),
        cost_estimate=cost,
    )(*operands)


def eca_reference(x, weight, bias, *, k_size=3):
    """Pure-JAX reference matching the PyTorch forward."""
    pooled = jnp.mean(x.astype(jnp.float32), axis=-1)            # (B, C)
    pad = (k_size - 1) // 2
    padded = jnp.pad(pooled, ((0, 0), (pad, pad)))
    conv = bias[0] + sum(
        weight[j] * padded[:, j: j + pooled.shape[1]] for j in range(k_size))
    gate = jax.nn.sigmoid(conv).astype(x.dtype)                  # (B, C)
    return (x * gate[:, :, None]).astype(x.dtype)


if __name__ == "__main__":
    B, C, L = 2, 16, 256        # L a multiple of 128 -> lane-dense stores
    k_size = 3

    key = jax.random.PRNGKey(0)
    kx, kw, kb = jax.random.split(key, 3)

    x = jax.random.normal(kx, (B, C, L), dtype=jnp.float32)

    # Deterministic Conv1d(1, 1, k_size) params (PyTorch-style uniform init).
    bound = 1.0 / (k_size ** 0.5)
    weight = jax.random.uniform(kw, (k_size,), jnp.float32, -bound, bound)
    bias = jax.random.uniform(kb, (1,), jnp.float32, -bound, bound)

    ref = eca_reference(x, weight, bias, k_size=k_size)

    # Auto tile selection (VMEM-limit-aware; full-C tiles, >=2 grid steps here).
    out_auto = jax.block_until_ready(eca_layer(x, weight, bias, k_size=k_size))
    # Forced channel tiling: exercises the halo path (2 tiles of 8 channels).
    out_tiled = jax.block_until_ready(
        eca_layer(x, weight, bias, k_size=k_size, c_tile=8, b_tile=1))
    # Forced batch + channel tiling: exercises b_tile > 1 with halos.
    out_btile = jax.block_until_ready(
        eca_layer(x, weight, bias, k_size=k_size, c_tile=8, b_tile=2))

    assert out_auto.shape == x.shape
    assert jnp.allclose(out_auto, ref, atol=1e-5, rtol=1e-5)
    assert jnp.allclose(out_tiled, ref, atol=1e-5, rtol=1e-5)
    assert jnp.allclose(out_btile, ref, atol=1e-5, rtol=1e-5)

    print("KERNEL_OK")
</pallas_src>

<mosaic_0001>
module attributes {stable_mosaic.version = 11 : i64} {
  func.func @_eca_kernel(%arg0: i32, %arg1: i32, %arg2: memref<3xf32, #tpu.memory_space<smem>>, %arg3: memref<1xf32, #tpu.memory_space<smem>>, %arg4: memref<1x16x256xf32, #tpu.memory_space<vmem>>, %arg5: memref<1x16x256xf32, #tpu.memory_space<vmem>>) attributes {dimension_semantics = [#tpu.dimension_semantics<parallel>, #tpu.dimension_semantics<parallel>], iteration_bounds = array<i64: 2, 1>, scalar_prefetch = 0 : i64, scratch_operands = 0 : i64, tpu.core_type = #tpu.core_type<tc>, window_params = [{transform_indices = @transform_0, window_bounds = array<i64: 3>}, {transform_indices = @transform_1, window_bounds = array<i64: 1>}, {transform_indices = @transform_2, window_bounds = array<i64: 1, 16, 256>}, {transform_indices = @transform_3, window_bounds = array<i64: 1, 16, 256>}]} {
    %c0 = arith.constant 0 : index
    %c0_0 = arith.constant 0 : index
    %c0_1 = arith.constant 0 : index
    %0 = vector.load %arg4[%c0, %c0_0, %c0_1] : memref<1x16x256xf32, #tpu.memory_space<vmem>>, vector<1x16x256xf32>
    %cst = arith.constant dense<0.000000e+00> : vector<1x16xf32>
    %1 = vector.multi_reduction <add>, %0, %cst [2] : vector<1x16x256xf32> to vector<1x16xf32>
    %cst_2 = arith.constant 3.906250e-03 : f32
    %2 = vector.broadcast %cst_2 : f32 to vector<1x16xf32>
    %3 = arith.mulf %1, %2 : vector<1x16xf32>
    %4 = tpu.iota {dimensions = array<i32: 1>} : vector<1x16xi32>
    %c0_3 = arith.constant 0 : index
    %5 = memref.load %arg3[%c0_3] : memref<1xf32, #tpu.memory_space<smem>>
    %6 = vector.broadcast %5 : f32 to vector<1x16xf32>
    %7 = vector.extract_strided_slice %3 {offsets = [0, 15], sizes = [1, 1], strides = [1, 1]} : vector<1x16xf32> to vector<1x1xf32>
    %8 = vector.extract_strided_slice %3 {offsets = [0, 0], sizes = [1, 15], strides = [1, 1]} : vector<1x16xf32> to vector<1x15xf32>
    %9 = tpu.concatenate %7, %8 in 1 : vector<1x1xf32>, vector<1x15xf32> -> vector<1x16xf32>
    %c-1_i32 = arith.constant -1 : i32
    %10 = vector.broadcast %c-1_i32 : i32 to vector<1x16xi32>
    %11 = arith.addi %4, %10 : vector<1x16xi32>
    %c0_i32 = arith.constant 0 : i32
    %12 = vector.broadcast %c0_i32 : i32 to vector<1x16xi32>
    %13 = arith.cmpi sge, %11, %12 : vector<1x16xi32>
    %c-1_i32_4 = arith.constant -1 : i32
    %14 = vector.broadcast %c-1_i32_4 : i32 to vector<1x16xi32>
    %15 = arith.addi %4, %14 : vector<1x16xi32>
    %c16_i32 = arith.constant 16 : i32
    %16 = vector.broadcast %c16_i32 : i32 to vector<1x16xi32>
    %17 = arith.cmpi slt, %15, %16 : vector<1x16xi32>
    %18 = arith.andi %13, %17 : vector<1x16xi1>
    %c0_5 = arith.constant 0 : index
    %19 = memref.load %arg2[%c0_5] : memref<3xf32, #tpu.memory_space<smem>>
    %cst_6 = arith.constant 0.000000e+00 : f32
    %20 = vector.broadcast %cst_6 : f32 to vector<1x16xf32>
    %21 = arith.select %18, %9, %20 : vector<1x16xi1>, vector<1x16xf32>
    %22 = vector.broadcast %19 : f32 to vector<1x16xf32>
    %23 = arith.mulf %22, %21 : vector<1x16xf32>
    %24 = arith.addf %6, %23 : vector<1x16xf32>
    %c1 = arith.constant 1 : index
    %25 = memref.load %arg2[%c1] : memref<3xf32, #tpu.memory_space<smem>>
    %26 = vector.broadcast %25 : f32 to vector<1x16xf32>
    %27 = arith.mulf %26, %3 : vector<1x16xf32>
    %28 = arith.addf %24, %27 : vector<1x16xf32>
    %29 = vector.extract_strided_slice %3 {offsets = [0, 1], sizes = [1, 15], strides = [1, 1]} : vector<1x16xf32> to vector<1x15xf32>
    %30 = vector.extract_strided_slice %3 {offsets = [0, 0], sizes = [1, 1], strides = [1, 1]} : vector<1x16xf32> to vector<1x1xf32>
    %31 = tpu.concatenate %29, %30 in 1 : vector<1x15xf32>, vector<1x1xf32> -> vector<1x16xf32>
    %c1_i32 = arith.constant 1 : i32
    %32 = vector.broadcast %c1_i32 : i32 to vector<1x16xi32>
    %33 = arith.addi %4, %32 : vector<1x16xi32>
    %c0_i32_7 = arith.constant 0 : i32
    %34 = vector.broadcast %c0_i32_7 : i32 to vector<1x16xi32>
    %35 = arith.cmpi sge, %33, %34 : vector<1x16xi32>
    %c1_i32_8 = arith.constant 1 : i32
    %36 = vector.broadcast %c1_i32_8 : i32 to vector<1x16xi32>
    %37 = arith.addi %4, %36 : vector<1x16xi32>
    %c16_i32_9 = arith.constant 16 : i32
    %38 = vector.broadcast %c16_i32_9 : i32 to vector<1x16xi32>
    %39 = arith.cmpi slt, %37, %38 : vector<1x16xi32>
    %40 = arith.andi %35, %39 : vector<1x16xi1>
    %c2 = arith.constant 2 : index
    %41 = memref.load %arg2[%c2] : memref<3xf32, #tpu.memory_space<smem>>
    %cst_10 = arith.constant 0.000000e+00 : f32
    %42 = vector.broadcast %cst_10 : f32 to vector<1x16xf32>
    %43 = arith.select %40, %31, %42 : vector<1x16xi1>, vector<1x16xf32>
    %44 = vector.broadcast %41 : f32 to vector<1x16xf32>
    %45 = arith.mulf %44, %43 : vector<1x16xf32>
    %46 = arith.addf %28, %45 : vector<1x16xf32>
    %47 = arith.negf %46 : vector<1x16xf32>
    %48 = math.exp %47 : vector<1x16xf32>
    %cst_11 = arith.constant 1.000000e+00 : f32
    %49 = vector.broadcast %cst_11 : f32 to vector<1x16xf32>
    %50 = arith.addf %49, %48 : vector<1x16xf32>
    %51 = arith.divf %49, %50 : vector<1x16xf32>
    %52 = vector.shape_cast %51 : vector<1x16xf32> to vector<1x16x1xf32>
    %53 = vector.broadcast %52 : vector<1x16x1xf32> to vector<1x16x256xf32>
    %54 = arith.mulf %0, %53 : vector<1x16x256xf32>
    %c0_12 = arith.constant 0 : index
    %c0_13 = arith.constant 0 : index
    %c0_14 = arith.constant 0 : index
    %55 = vector.load %arg5[%c0_12, %c0_13, %c0_14] : memref<1x16x256xf32, #tpu.memory_space<vmem>>, vector<1x16x256xf32>
    tpu.vector_store %arg5[%c0_12, %c0_13, %c0_14], %54 {strides = array<i32>} : memref<1x16x256xf32, #tpu.memory_space<vmem>>, vector<1x16x256xf32>,
    return
  }
  func.func @transform_0(%arg0: i32, %arg1: i32) -> i32 {
    %c0_i32 = arith.constant 0 : i32
    %c0_i32_0 = arith.constant 0 : i32
    return %c0_i32 : i32
  }
  func.func @transform_1(%arg0: i32, %arg1: i32) -> i32 {
    %c0_i32 = arith.constant 0 : i32
    %c0_i32_0 = arith.constant 0 : i32
    return %c0_i32 : i32
  }
  func.func @transform_2(%arg0: i32, %arg1: i32) -> (i32, i32, i32) {
    %c0_i32 = arith.constant 0 : i32
    %c0_i32_0 = arith.constant 0 : i32
    return %arg0, %arg1, %c0_i32 : i32, i32, i32
  }
  func.func @transform_3(%arg0: i32, %arg1: i32) -> (i32, i32, i32) {
    %c0_i32 = arith.constant 0 : i32
    %c0_i32_0 = arith.constant 0 : i32
    return %arg0, %arg1, %c0_i32 : i32, i32, i32
  }
}

</mosaic_0001>

<llo_original>
// kernel: tpu_custom_call.1
$region0: #{tpu_custom_call.1}
  #allocation0 [shape = 'u32[]', space=smem, size = 0x4, offset = 0x4, fixed_abs, tag = 'smem constant byte address 0x4 - core index']
  #allocation1 [shape = 'u32[144,128]{1,0:T(1,128)}', space=vmem, size = 0x12000, scoped, tag = 'internal scratch']
  #allocation2 [shape = 'f32[1]{0:T(128)S(6)}', space=smem, size = 0x200, scoped, tag = 'scoped memory for tpu_custom_call.1']
  %s0 = inlined_call_operand.vmem [shape: f32[3], index: 0, kind: input, shape index: {}]
  %s1 = inlined_call_operand.<no memory space> [shape: f32[1], index: 1, kind: input, shape index: {}]
  %s2 = inlined_call_operand.hbm [shape: f32[2,16,256], index: 2, kind: input, shape index: {}]
  %s3 = inlined_call_operand.hbm [shape: f32[2,16,256], index: 3, kind: output, shape index: {}]
  %s4 = sld [smem:[#allocation0]]
  $region53: #{tpu_custom_call.1} parent=0
    _
  %s6 = ssub.s32 1, %s4
  %s7 = scalar_select 0, %s6, %s4
  %8 = sst [smem:[#allocation2]] %s1
  $region1: #{tpu_custom_call.1} parent=0
    #allocation3 [shape = 'u8[512]{0}', space=smem, size = 0x200, scoped, tag = 'input window, operand 0, single buffered']
    #allocation4 [shape = 's32[2]{0}', space=sflag, size = 0x8, scoped, tag = 'scoped memory for tpu_custom_call.1']
    #allocation5 [shape = 's32[2]{0}', space=sflag, size = 0x8, scoped, tag = 'scoped memory for tpu_custom_call.1']
    #allocation6 [shape = 's32[2]{0}', space=sflag, size = 0x8, scoped, tag = 'scoped memory for tpu_custom_call.1']
    #allocation7 [shape = 'u8[32768]{0}', space=vmem, size = 0x8000, scoped, tag = 'input window, operand 2']
    #allocation8 [shape = 'u8[32768]{0}', space=vmem, size = 0x8000, scoped, tag = 'output window, operand 0']
    %9 = vsyncpa [#allocation6], 0
    %10 = vsyncpa [#allocation4], 0
    %s11 = scalar_lea.sflag [#allocation4], 1
    %12 = vsyncpa %s11, 0
    %13 = vsyncpa [#allocation5], 0
    %s14 = scalar_lea.sflag [#allocation5], 1
    %15 = vsyncpa %s14, 0
    loop: start=0, step=1, limit=4
    $region2: #{tpu_custom_call.1} parent=1 // loop_pre_header
      _
    $region3: #{tpu_custom_call.1} parent=1 // loop_header
      %s17 = sphi 0, %s21
      %p18 = scmp.ge.s32.totalorder %s17, 4
      %s24 = sphi 0, %s36
      %s25 = sphi 0, %s32
      %s26 = sphi 0, %s24
      %s27 = sphi 0, %s25
      %s28 = sphi 0, %s26
      %s29 = sphi 0, %s27
      %s37 = sphi 0, %s37
      %s39 = sphi 0, %s37
      %s40 = sphi 0, %s39
      %s54 = sphi 0, %s40
      %s58 = sphi 0, %s58
      %s60 = sphi 0, %s58
      %s61 = sphi 0, %s60
      %s75 = sphi 0, %s61
      %s83 = sphi 0, %s85
      %s86 = sphi 0, %s83
      %s87 = sphi 0, %s86
      %s103 = sphi 0, %s87
      %s111 = sphi 0, %s113
      %s114 = sphi 0, %s111
      %s115 = sphi 0, %s114
      %s131 = sphi 0, %s115
    $region4: #{tpu_custom_call.1} parent=1 // loop_header_branch
      %20 = sbr.rel (%p18) target = $region8
    $region5: #{tpu_custom_call.1} parent=1 // loop_body
      %s22 = ssub.s32 %s17, 1
      %s23 = ssub.s32 %s17, 2
      %s30 = sadd.s32 1, %s25
      %p31 = scmp.ge.s32.totalorder %s30, 1
      %s32 = scalar_select %p31, 0, %s30
      %s33 = sadd.s32 1, %s24
      %s34 = scalar_select %p31, %s33, %s24
      %p35 = scmp.ge.s32.totalorder %s34, 2
      %s36 = scalar_select %p35, 0, %s34
      %s38 = sadd.s32 %s37, 1
      %p41 = scmp.eq.s32.totalorder %s17, 1
      %p42 = scmp.ne.s32.totalorder %s37, %s39
      %p43 = scmp.eq.s32.totalorder %s17, 0
      %p44 = por %p42, %p43
      %p45 = scmp.ne.s32.totalorder %s37, %s39
      %p46 = scmp.eq.s32.totalorder %s22, 1
      %p47 = por %p45, %p46
      %p48 = scmp.ne.s32.totalorder %s39, %s40
      %p49 = scmp.eq.s32.totalorder %s22, 0
      %p50 = por %p48, %p49
      %p51 = scmp.ne.s32.totalorder %s39, %s40
      %p52 = scmp.eq.s32.totalorder %s23, 1
      %p53 = por %p51, %p52
      %p55 = scmp.ne.s32.totalorder %s40, %s54
      %p56 = scmp.eq.s32.totalorder %s23, 0
      %p57 = por %p55, %p56
      %s59 = sadd.s32 %s58, 1
      %p62 = scmp.eq.s32.totalorder %s17, 1
      %p63 = scmp.ne.s32.totalorder %s58, %s60
      %p64 = scmp.eq.s32.totalorder %s17, 0
      %p65 = por %p63, %p64
      %p66 = scmp.ne.s32.totalorder %s58, %s60
      %p67 = scmp.eq.s32.totalorder %s22, 1
      %p68 = por %p66, %p67
      %p69 = scmp.ne.s32.totalorder %s60, %s61
      %p70 = scmp.eq.s32.totalorder %s22, 0
      %p71 = por %p69, %p70
      %p72 = scmp.ne.s32.totalorder %s60, %s61
      %p73 = scmp.eq.s32.totalorder %s23, 1
      %p74 = por %p72, %p73
      %p76 = scmp.ne.s32.totalorder %s61, %s75
      %p77 = scmp.eq.s32.totalorder %s23, 0
      %p78 = por %p76, %p77
      %s79 = ssub.s32 %s24, %s36
      %s80 = ssub.s32 %s25, %s32
      %s81 = sor.u32 %s79, %s80
      %p82 = scmp.eq.s32.totalorder %s81, 0
      %s84 = sadd.s32 %s83, 1
      %s85 = scalar_select %p82, %s83, %s84
      %p88 = pneg %p82
      %p89 = scmp.eq.s32.totalorder %s17, 1
      %p90 = por %p88, %p89
      %p91 = scmp.ne.s32.totalorder %s83, %s86
      %p92 = scmp.eq.s32.totalorder %s17, 0
      %p93 = por %p91, %p92
      %p94 = scmp.ne.s32.totalorder %s83, %s86
      %p95 = scmp.eq.s32.totalorder %s22, 1
      %p96 = por %p94, %p95
      %p97 = scmp.ne.s32.totalorder %s86, %s87
      %p98 = scmp.eq.s32.totalorder %s22, 0
      %p99 = por %p97, %p98
      %p100 = scmp.ne.s32.totalorder %s86, %s87
      %p101 = scmp.eq.s32.totalorder %s23, 1
      %p102 = por %p100, %p101
      %p104 = scmp.ne.s32.totalorder %s87, %s103
      %p105 = scmp.eq.s32.totalorder %s23, 0
      %p106 = por %p104, %p105
      %s107 = ssub.s32 %s24, %s36
      %s108 = ssub.s32 %s25, %s32
      %s109 = sor.u32 %s107, %s108
      %p110 = scmp.eq.s32.totalorder %s109, 0
      %s112 = sadd.s32 %s111, 1
      %s113 = scalar_select %p110, %s111, %s112
      %p116 = pneg %p110
      %p117 = scmp.eq.s32.totalorder %s17, 1
      %p118 = por %p116, %p117
      %p119 = scmp.ne.s32.totalorder %s111, %s114
      %p120 = scmp.eq.s32.totalorder %s17, 0
      %p121 = por %p119, %p120
      %p122 = scmp.ne.s32.totalorder %s111, %s114
      %p123 = scmp.eq.s32.totalorder %s22, 1
      %p124 = por %p122, %p123
      %p125 = scmp.ne.s32.totalorder %s114, %s115
      %p126 = scmp.eq.s32.totalorder %s22, 0
      %p127 = por %p125, %p126
      %p128 = scmp.ne.s32.totalorder %s114, %s115
      %p129 = scmp.eq.s32.totalorder %s23, 1
      %p130 = por %p128, %p129
      %p132 = scmp.ne.s32.totalorder %s115, %s131
      %p133 = scmp.eq.s32.totalorder %s23, 0
      %p134 = por %p132, %p133
      %p135 = scmp.le.s32.totalorder 1, %s17
      %p136 = scmp.lt.s32.totalorder %s17, 3
      %p137 = pnand %p135, %p136
      %p138 = pneg %p137
      // Predicated region
      $region9: #{tpu_custom_call.1} parent=5 // pred_check
        _
      $region10: #{tpu_custom_call.1} parent=5 // pred_check_branch
        %140 = sbr.rel (%p137) target = $region12
      $region11: #{tpu_custom_call.1} parent=5 // pred_region
        %s141 = ssub.s32 %s17, 1
        // Predicated region
        $region13: #{tpu_custom_call.1} parent=11 // pred_check
          %p142 = pneg %p50
        $region14: #{tpu_custom_call.1} parent=11 // pred_check_branch
          %144 = sbr.rel (%p142) target = $region16
        $region15: #{tpu_custom_call.1} parent=11 // pred_region
          %s146 = ssub.s32 16, 16
          %147 = vsyncadd [#allocation6], %s146
          %s149 = sshll.u32 %s0, 4
          %s150 = int_to_ptr.vmem [resolvable:$true] %s149
          %152 = dma.vmem_to_smem %s150, 16, [#allocation3], [#allocation6]
        $region16: #{tpu_custom_call.1} parent=11 // pred_fallthru
          _
        // Predicated region
        $region17: #{tpu_custom_call.1} parent=11 // pred_check
          %p153 = pneg %p71
        $region18: #{tpu_custom_call.1} parent=11 // pred_check_branch
          %155 = sbr.rel (%p153) target = $region20
        $region19: #{tpu_custom_call.1} parent=11 // pred_region
          _
        $region20: #{tpu_custom_call.1} parent=11 // pred_fallthru
          _
      $region12: #{tpu_custom_call.1} parent=5 // pred_fallthru
        _
      %p156 = scmp.lt.s32.totalorder %s17, 2
      // Predicated region
      $region21: #{tpu_custom_call.1} parent=5 // pred_check
        %p157 = pneg %p156
      $region22: #{tpu_custom_call.1} parent=5 // pred_check_branch
        %159 = sbr.rel (%p157) target = $region24
      $region23: #{tpu_custom_call.1} parent=5 // pred_region
        // Predicated region
        $region25: #{tpu_custom_call.1} parent=23 // pred_check
          %p160 = pneg %p93
        $region26: #{tpu_custom_call.1} parent=23 // pred_check_branch
          %162 = sbr.rel (%p160) target = $region28
        $region27: #{tpu_custom_call.1} parent=23 // pred_region
          %s163 = sand.u32 %s83, 1
          %s164 = scalar_lea.sflag [#allocation4], %s163
          %s165 = sand.u32 %s83, 1
          %s166 = smul.addr %s165, 32
          %s167 = scalar_lea.vmem [#allocation7], %s166
          %s168 = smul.u32 2, %s25
          %s170 = ssub.s32 512, 512
          %171 = vsyncadd %s164, %s170
          %s172 = smul.addr %s168, 2
          %s173 = smul.addr %s24, 4
          %s174 = sadd.s32 %s172, %s173
          %s175 = smul.addr %s174, 128
          %s176 = scalar_lea.hbm %s2, %s175
          %s177 = sshll.u32 %s167, 4
          %s178 = int_to_ptr.vmem [resolvable:$true] %s177
          %183 = dma.hbm_to_vmem [thread:$0]  %s176, 512, %s178, %s164, 256, 256, 16
        $region28: #{tpu_custom_call.1} parent=23 // pred_fallthru
          _
      $region24: #{tpu_custom_call.1} parent=5 // pred_fallthru
        _
      %p184 = scmp.le.s32.totalorder 1, %s17
      %p185 = scmp.lt.s32.totalorder %s17, 3
      %p186 = pnand %p184, %p185
      %p187 = pneg %p186
      // Predicated region
      $region29: #{tpu_custom_call.1} parent=5 // pred_check
        _
      $region30: #{tpu_custom_call.1} parent=5 // pred_check_branch
        %189 = sbr.rel (%p186) target = $region32
      $region31: #{tpu_custom_call.1} parent=5 // pred_region
        %s190 = ssub.s32 %s17, 1
        // Predicated region
        $region33: #{tpu_custom_call.1} parent=31 // pred_check
          %p191 = pneg %p50
        $region34: #{tpu_custom_call.1} parent=31 // pred_check_branch
          %193 = sbr.rel (%p191) target = $region36
        $region35: #{tpu_custom_call.1} parent=31 // pred_region
          %194 = dma.done [#allocation6], 16
        $region36: #{tpu_custom_call.1} parent=31 // pred_fallthru
          _
        %s195 = sand.u32 %s86, 1
        %s196 = scalar_lea.sflag [#allocation4], %s195
        %s197 = sand.u32 %s86, 1
        %s198 = smul.addr %s197, 32
        %s199 = scalar_lea.vmem [#allocation7], %s198
        // Predicated region
        $region37: #{tpu_custom_call.1} parent=31 // pred_check
          %p200 = pneg %p99
        $region38: #{tpu_custom_call.1} parent=31 // pred_check_branch
          %202 = sbr.rel (%p200) target = $region40
        $region39: #{tpu_custom_call.1} parent=31 // pred_region
          %203 = dma.done %s196, 512
        $region40: #{tpu_custom_call.1} parent=31 // pred_fallthru
          _
        %204 = sfence
        %p205 = pneg %p50
        %p206 = pneg %p47
        %p207 = pneg %p71
        %p208 = pneg %p68
        %s209 = sand.u32 %s86, 1
        %s210 = scalar_lea.sflag [#allocation4], %s209
        %s211 = sand.u32 %s86, 1
        %s212 = smul.addr %s211, 32
        %s213 = scalar_lea.vmem [#allocation7], %s212
        %p214 = pneg %p99
        %p215 = pneg %p96
        %p216 = pneg %p127
        %p217 = pneg %p124
        %s218 = sand.u32 %s114, 1
        %s219 = scalar_lea.sflag [#allocation5], %s218
        %s220 = sand.u32 %s114, 1
        %s221 = smul.addr %s220, 32
        %s222 = scalar_lea.vmem [#allocation8], %s221
        %s223 = smul.u32 2, %s27
        %s224 = smul.u32 2, %s27
        %v225 = vld [vmem:[%s199] sm:$0xff]
        %v226 = vld [vmem:[%s199 + $0x8] sm:$0xff]
        %v227 = vld [vmem:[%s199 + $0x10] sm:$0xff]
        %v228 = vld [vmem:[%s199 + $0x18] sm:$0xff]
        %v229 = vadd.f32 %v225, %v226
        %230 = vadd.xlane.f32.xlu0 %v229
        %v231 = vpop.xlane.xlu0 %230
        %v232 = vadd.f32 %v227, %v228
        %233 = vadd.xlane.f32.xlu0 %v232
        %v234 = vpop.xlane.xlu0 %233
        %v235 = vmul.f32 %v231, 0.00390625
        %v236 = vmul.f32 %v234, 0.00390625
        %v237 = vlaneseq
        %v238 = vand.u32 %v237, 127
        %s239 = sld [smem:[#allocation2]]
        %v240 = vstv %s239
        %v243 = vadd.s32 %v238, 4294967295
        %v244 = vlaneseq
        %v245 = vshrl.u32 %v244, 7
        %v246 = vsub.s32 %v243, %v245
        %v247 = vrot.slane %v235, %v246
        %v248 = vadd.s32 %v238, 4294967287
        %v249 = vlaneseq
        %v250 = vshrl.u32 %v249, 7
        %v251 = vsub.s32 %v248, %v250
        %v252 = vrot.slane %v236, %v251
        %vm253 = vcmask 138312
        %v254 = vsel %vm253, %v252, %v247
        %vm256 = vcmask 7168
        %v257 = vsel %vm256, %v236, %v254
        %vm258 = vcmp.ge.s32.totalorder %v243, 0
        %vm259 = vcmp.lt.s32.totalorder %v243, 16
        %vm260 = vmand %vm258, %vm259
        %s261 = sld [smem:[#allocation3]]
        %v262 = vsel %vm260, %v257, 0.0
        %v263 = vstv %s261
        %v264 = vmul.f32 %v263, %v262
        %v265 = vadd.f32 %v240, %v264
        %s266 = sld [smem:[#allocation3 + $0x1]]
        %v267 = vstv %s266
        %v268 = vmul.f32 %v267, %v235
        %v269 = vmul.f32 %v267, %v236
        %v272 = vlaneseq
        %v273 = vshrl.u32 %v272, 7
        %v274 = vsub.s32 %v238, %v273
        %v275 = vrot.slane %v268, %v274
        %v276 = vadd.s32 %v238, 4294967288
        %v277 = vlaneseq
        %v278 = vshrl.u32 %v277, 7
        %v279 = vsub.s32 %v276, %v278
        %v280 = vrot.slane %v269, %v279
        %vm281 = vcmask 130112
        %v282 = vsel %vm281, %v280, %v275
        %v284 = vadd.f32 %v265, %v282
        %v285 = vadd.s32 %v238, 1
        %v286 = vlaneseq
        %v287 = vshrl.u32 %v286, 7
        %v288 = vsub.s32 %v285, %v287
        %v289 = vrot.slane %v235, %v288
        %v290 = vadd.s32 %v238, 4294967289
        %v291 = vlaneseq
        %v292 = vshrl.u32 %v291, 7
        %v293 = vsub.s32 %v290, %v292
        %v294 = vrot.slane %v236, %v293
        %vm295 = vcmask 121912
        %v296 = vsel %vm295, %v294, %v289
        %v298 = vrot.slane %v235, 7
        %vm300 = vcmask 121856
        %v301 = vsel %vm300, %v296, %v298
        %vm302 = vcmp.ge.s32.totalorder %v285, 0
        %vm303 = vcmp.lt.s32.totalorder %v285, 16
        %vm304 = vmand %vm302, %vm303
        %s305 = sld [smem:[#allocation3 + $0x2]]
        %v306 = vsel %vm304, %v301, 0.0
        %v307 = vstv %s305
        %v308 = vmul.f32 %v307, %v306
        %v310 = vrot.slane %v308, 2
        %v312 = vadd.f32 %v284, %v310
        %v313 = vxor.u32 %v312, 2147483648
        %v314 = vmul.f32 %v313, 1.442695
        %v315 = vpow.pop %v314
        %v316 = vadd.f32 %v315, 1.0
        %v317 = vrcp.pop %v316
        %v318 = vmul.f32 1.0, %v317
        %v319 = vlaneseq
        %v320 = vshrl.u32 %v319, 7
        %v321 = vsub.s32 7, %v320
        %v322 = vrot.slane %v318, %v321
        %324 = vbcast.lane.b32.xlu0 %v322, 256
        %v325 = vpop.permute.xlu0 %324
        %s327 = sor.u32 256, 8
        %328 = vbcast.lane.b32.xlu0 %v322, %s327
        %v329 = vpop.permute.xlu0 %328
        %v330 = vmul.f32 %v225, %v325
        %v331 = vmul.f32 %v226, %v325
        %v332 = vmul.f32 %v227, %v329
        %v333 = vmul.f32 %v228, %v329
        %334 = vst [vmem:[%s222] sm:$0xff] %v330
        %335 = vst [vmem:[%s222 + $0x8] sm:$0xff] %v331
        %336 = vst [vmem:[%s222 + $0x10] sm:$0xff] %v332
        %337 = vst [vmem:[%s222 + $0x18] sm:$0xff] %v333
        %s338 = sand.u32 %s114, 1
        %s339 = scalar_lea.sflag [#allocation5], %s338
        %s340 = sand.u32 %s114, 1
        %s341 = smul.addr %s340, 32
        %s342 = scalar_lea.vmem [#allocation8], %s341
        // Predicated region
        $region41: #{tpu_custom_call.1} parent=31 // pred_check
          %p343 = pneg %p124
        $region42: #{tpu_custom_call.1} parent=31 // pred_check_branch
          %345 = sbr.rel (%p343) target = $region44
        $region43: #{tpu_custom_call.1} parent=31 // pred_region
          %s346 = smul.u32 2, %s27
          %s348 = ssub.s32 512, 512
          %349 = vsyncadd %s339, %s348
          %s350 = smul.addr %s346, 2
          %s351 = smul.addr %s26, 4
          %s352 = sadd.s32 %s350, %s351
          %s353 = smul.addr %s352, 128
          %s354 = scalar_lea.hbm %s3, %s353
          %s355 = sshll.u32 %s342, 4
          %s356 = int_to_ptr.vmem [resolvable:$true] %s355
          %361 = dma.vmem_to_hbm [thread:$0]  %s356, 512, %s354, %s339, 256, 256, 16
        $region44: #{tpu_custom_call.1} parent=31 // pred_fallthru
          _
      $region32: #{tpu_custom_call.1} parent=5 // pred_fallthru
        _
      %p362 = scmp.le.s32.totalorder 2, %s17
      // Predicated region
      $region45: #{tpu_custom_call.1} parent=5 // pred_check
        %p363 = pneg %p362
      $region46: #{tpu_custom_call.1} parent=5 // pred_check_branch
        %365 = sbr.rel (%p363) target = $region48
      $region47: #{tpu_custom_call.1} parent=5 // pred_region
        %s366 = ssub.s32 %s17, 2
        // Predicated region
        $region49: #{tpu_custom_call.1} parent=47 // pred_check
          %p367 = pneg %p130
        $region50: #{tpu_custom_call.1} parent=47 // pred_check_branch
          %369 = sbr.rel (%p367) target = $region52
        $region51: #{tpu_custom_call.1} parent=47 // pred_region
          %s370 = sand.u32 %s115, 1
          %s371 = scalar_lea.sflag [#allocation5], %s370
          %s372 = sand.u32 %s115, 1
          %s373 = smul.addr %s372, 32
          %s374 = scalar_lea.vmem [#allocation8], %s373
          %375 = dma.done %s371, 512
        $region52: #{tpu_custom_call.1} parent=47 // pred_fallthru
          _
      $region48: #{tpu_custom_call.1} parent=5 // pred_fallthru
        _
    $region6: #{tpu_custom_call.1} parent=1 // loop_footer
      %s21 = sadd.s32 1, %s17
    $region7: #{tpu_custom_call.1} parent=1 // loop_footer_branch
      %16 = sbr.rel target = $region3
    $region8: #{tpu_custom_call.1} parent=1 // loop_exit
      _
    %376 = vsyncpa [#allocation4], 1
    %s377 = scalar_lea.sflag [#allocation4], 1
    %378 = vsyncpa %s377, 1
    %379 = vsyncpa [#allocation5], 1
    %s380 = scalar_lea.sflag [#allocation5], 1
    %381 = vsyncpa %s380, 1
    %382 = vsyncpa [#allocation6], 1
    %s383 = scalar_lea.sflag [#allocation6], 1
    %384 = vsyncpa %s383, 1

</llo_original>
